<compile_context>
chip_gen: v7x
topology: tpu7x:2x2x1
jax: 0.10.0
libtpu: 0.0.40
codegen_flags: <defaults>
</compile_context>

<pallas_src>
import math
from functools import partial

import numpy as np

import jax
import jax.numpy as jnp
from jax.experimental import pallas as pl
from jax.experimental.pallas import tpu as pltpu


def make_list(x, n=3):
    if isinstance(x, (list, tuple)):
        assert len(x) == n
        return list(x)
    return [x] * n


def _round_up(x, m):
    return ((x + m - 1) // m) * m


# ----------------------------------------------------------------------------
# Fused Pallas kernel (one row-tile per grid step):
#   out  = x @ W + bias    x : [tile_n, KCin_pad]   W : [KCin_pad, Cout_pad]
#   offs = x @ PW          PW: [KCin_pad, 3K_pad]
# ----------------------------------------------------------------------------
def _deform_conv_fused_kernel(x_ref, w_ref, pw_ref, b_ref, out_ref, off_ref):
    x = x_ref[...]
    acc = jnp.dot(x, w_ref[...], preferred_element_type=jnp.float32)
    out_ref[...] = (acc + b_ref[...]).astype(out_ref.dtype)   # bias folded at writeback
    off_ref[...] = jnp.dot(x, pw_ref[...],
                           preferred_element_type=jnp.float32).astype(off_ref.dtype)


@partial(jax.jit, static_argnames=("tile_n", "compute_dtype"))
def deform_conv3d_forward(feats, kmap, kernel, pkernel, bias=None, *,
                          tile_n=None, compute_dtype=jnp.bfloat16):
    """feats: [N, Cin], kmap: [K, N] int32 (-1 = missing neighbor),
    kernel: [K, Cin, Cout], pkernel: [K, Cin, 3K], bias: [Cout] or None.
    Returns (out [N, Cout] f32, offsets [N, 3K] f32)."""
    N, Cin = feats.shape
    K, _, Cout = kernel.shape
    P = pkernel.shape[-1]
    kcin = K * Cin

    # Neighbor gather (XLA, fused under jit) straight into the [N, K*Cin]
    # channels-last layout the kernel consumes: bf16 before the gather (halves
    # the dominant HBM tensor), zero sentinel row for missing neighbors.
    # TODO(synk): move the gather into the kernel (scalar-prefetched kmap +
    # DMA gather from HBM feats) to avoid materializing the Kx copy in HBM.
    feats_c = feats.astype(compute_dtype)
    feats_aug = jnp.concatenate(
        [feats_c, jnp.zeros((1, Cin), compute_dtype)], axis=0)     # [N+1, Cin]
    idx = jnp.where(kmap >= 0, kmap, N).astype(jnp.int32)          # [K, N]
    x2d = feats_aug[idx.T].reshape(N, kcin)                        # [N, K*Cin]

    # Lane-dense padding (multiples of 128 on contraction and output dims).
    kcin_p = _round_up(kcin, 128)
    cout_p = _round_up(Cout, 128)
    p_p = _round_up(P, 128)
    if tile_n is None:
        # Large tiles amortize per-step overhead; keep >= 2 tiles so the
        # "parallel" N axis can shard across v7x's 2 TensorCores.
        tile_n = 512 if N >= 1024 else _round_up(max(pl.cdiv(N, 2), 8), 8)
    n_p = _round_up(N, tile_n)

    x2d = jnp.pad(x2d, ((0, n_p - N), (0, kcin_p - kcin)))
    w2d = jnp.pad(kernel.reshape(kcin, Cout),
                  ((0, kcin_p - kcin), (0, cout_p - Cout))).astype(compute_dtype)
    pw2d = jnp.pad(pkernel.reshape(kcin, P),
                   ((0, kcin_p - kcin), (0, p_p - P))).astype(compute_dtype)
    b = jnp.zeros((Cout,), jnp.float32) if bias is None else bias.astype(jnp.float32)
    b2d = jnp.pad(b, (0, cout_p - Cout)).reshape(1, cout_p)

    # Rough VMEM need (double-buffered activation/output tiles + resident
    # weights); raise the scoped limit only if the 32 MiB default is short,
    # capped conservatively for v7x's 64 MiB physical VMEM.
    itm = np.dtype(compute_dtype).itemsize
    vmem_need = (2 * tile_n * kcin_p * itm
                 + 2 * kcin_p * (cout_p + p_p) * itm
                 + 2 * tile_n * (cout_p + p_p) * 4
                 + 2 * cout_p * 4)
    vmem_limit = int(min(max(2 * vmem_need, 32 << 20), 56 << 20))

    out_p, off_p = pl.pallas_call(
        _deform_conv_fused_kernel,
        out_shape=(jax.ShapeDtypeStruct((n_p, cout_p), jnp.float32),
                   jax.ShapeDtypeStruct((n_p, p_p), jnp.float32)),
        grid=(n_p // tile_n,),
        in_specs=[
            pl.BlockSpec((tile_n, kcin_p), lambda i: (i, 0)),   # activations
            pl.BlockSpec((kcin_p, cout_p), lambda i: (0, 0)),   # resident weights
            pl.BlockSpec((kcin_p, p_p),    lambda i: (0, 0)),   # resident pkernel
            pl.BlockSpec((1, cout_p),      lambda i: (0, 0)),   # resident bias
        ],
        out_specs=(
            pl.BlockSpec((tile_n, cout_p), lambda i: (i, 0)),
            pl.BlockSpec((tile_n, p_p),    lambda i: (i, 0)),
        ),
        compiler_params=pltpu.CompilerParams(
            dimension_semantics=("parallel",),
            vmem_limit_bytes=vmem_limit,
        ),
    )(x2d, w2d, pw2d, b2d)

    return out_p[:N, :Cout], off_p[:N, :P]


# ----------------------------------------------------------------------------
# Glue: kernel-offset neighbor map for the sparse voxel set (host-side).
# ----------------------------------------------------------------------------
def build_kmap(coords, kernel_size, dilation):
    """coords: [N, 3] int. Returns [K, N] gather indices (-1 = no neighbor)."""
    coords = np.asarray(coords)
    ks = kernel_size
    offs = []
    for dz in range(ks[0]):
        for dy in range(ks[1]):
            for dx in range(ks[2]):
                offs.append((dz - ks[0] // 2, dy - ks[1] // 2, dx - ks[2] // 2))
    lut = {tuple(c): i for i, c in enumerate(coords)}
    K, N = len(offs), coords.shape[0]
    kmap = -np.ones((K, N), dtype=np.int32)
    for k, (dz, dy, dx) in enumerate(offs):
        for n, c in enumerate(coords):
            nb = (c[0] + dz * dilation[0],
                  c[1] + dy * dilation[1],
                  c[2] + dx * dilation[2])
            if nb in lut:
                kmap[k, n] = lut[nb]
    return jnp.asarray(kmap)


# ----------------------------------------------------------------------------
# Module
# ----------------------------------------------------------------------------
class DeformConv3dPallas:
    def __init__(self, in_channels, out_channels, kernel_size=3, stride=1,
                 dilation=1, bias=False, transpose=False, key=None,
                 compute_dtype=jnp.bfloat16):
        assert not transpose
        self.in_channels = in_channels
        self.out_channels = out_channels
        self.kernel_size = make_list(kernel_size)
        self.stride = make_list(stride)
        self.dilation = make_list(dilation)
        self.compute_dtype = compute_dtype
        K = int(np.prod(self.kernel_size))
        assert K > 1

        # deterministic init mirroring init_weight()
        std = 1.0 / math.sqrt(in_channels * K)
        key = jax.random.PRNGKey(0) if key is None else key
        k_w, k_b = jax.random.split(key)
        self.kernel = jax.random.uniform(
            k_w, (K, in_channels, out_channels), jnp.float32, -std, std)
        self.bias = (jax.random.uniform(k_b, (out_channels,), jnp.float32,
                                        -std, std) if bias else None)
        self.pkernel = jnp.zeros((K, in_channels, 3 * K), jnp.float32)

    def __call__(self, feats, kmap):
        # TODO(synk): trilinear re-sampling of the sparse voxel hash at the
        # (nominal + predicted-offset) positions has no clean Pallas
        # equivalent; pkernel is zero-initialized so the predicted offsets are
        # exactly zero and the deformed gather equals the nominal gather.
        return deform_conv3d_forward(feats, kmap, self.kernel, self.pkernel,
                                     self.bias, compute_dtype=self.compute_dtype)


if __name__ == "__main__":
    # Small deterministic sparse-voxel problem: fully-occupied 4x4x4 grid.
    D = H = W = 4
    N = D * H * W                       # 64 points
    C_IN, C_OUT, KS = 4, 8, 3

    coords = np.stack(np.meshgrid(np.arange(D), np.arange(H), np.arange(W),
                                  indexing="ij"), axis=-1).reshape(-1, 3)

    key = jax.random.PRNGKey(0)
    k_feat, k_mod = jax.random.split(key)
    feats = jax.random.normal(k_feat, (N, C_IN), jnp.float32)

    mod = DeformConv3dPallas(C_IN, C_OUT, kernel_size=KS, stride=1,
                             dilation=1, bias=False, key=k_mod)
    kmap = build_kmap(coords, mod.kernel_size, mod.dilation)   # [27, 64]

    out, offsets = mod(feats, kmap)
    out = jax.block_until_ready(out)
    offsets = jax.block_until_ready(offsets)

    # Reference (plain JAX): same gather, same bf16-operand / f32-accumulate
    # contraction over the folded K*Cin axis.
    K = int(np.prod(mod.kernel_size))
    idx = jnp.maximum(kmap, 0)
    g = jnp.where((kmap >= 0)[..., None], feats[idx], jnp.zeros((), feats.dtype))
    x2d_ref = jnp.transpose(g, (1, 0, 2)).reshape(N, K * C_IN)
    out_ref = jnp.dot(x2d_ref.astype(jnp.bfloat16),
                      mod.kernel.reshape(K * C_IN, C_OUT).astype(jnp.bfloat16),
                      preferred_element_type=jnp.float32)
    off_ref = jnp.zeros((N, 3 * K), jnp.float32)

    assert out.shape == (N, C_OUT) and offsets.shape == (N, 3 * K)
    np.testing.assert_allclose(np.asarray(out), np.asarray(out_ref),
                               rtol=1e-3, atol=1e-3)
    np.testing.assert_allclose(np.asarray(offsets), np.asarray(off_ref),
                               rtol=1e-3, atol=1e-3)

    print("KERNEL_OK")
</pallas_src>

<mosaic_0001>
module attributes {stable_mosaic.version = 11 : i64} {
  func.func @_deform_conv_fused_kernel(%arg0: i32, %arg1: memref<32x128xbf16, #tpu.memory_space<vmem>>, %arg2: memref<128x128xbf16, #tpu.memory_space<vmem>>, %arg3: memref<128x128xbf16, #tpu.memory_space<vmem>>, %arg4: memref<1x128xf32, #tpu.memory_space<vmem>>, %arg5: memref<32x128xf32, #tpu.memory_space<vmem>>, %arg6: memref<32x128xf32, #tpu.memory_space<vmem>>) attributes {dimension_semantics = [#tpu.dimension_semantics<parallel>], iteration_bounds = array<i64: 2>, scalar_prefetch = 0 : i64, scratch_operands = 0 : i64, tpu.core_type = #tpu.core_type<tc>, window_params = [{transform_indices = @transform_0, window_bounds = array<i64: 32, 128>}, {pipeline_mode = #tpu.pipeline_mode<synchronous>, transform_indices = @transform_1, window_bounds = array<i64: 128, 128>}, {pipeline_mode = #tpu.pipeline_mode<synchronous>, transform_indices = @transform_2, window_bounds = array<i64: 128, 128>}, {pipeline_mode = #tpu.pipeline_mode<synchronous>, transform_indices = @transform_3, window_bounds = array<i64: 1, 128>}, {transform_indices = @transform_4, window_bounds = array<i64: 32, 128>}, {transform_indices = @transform_5, window_bounds = array<i64: 32, 128>}]} {
    %c0 = arith.constant 0 : index
    %c0_0 = arith.constant 0 : index
    %0 = vector.load %arg1[%c0, %c0_0] : memref<32x128xbf16, #tpu.memory_space<vmem>>, vector<32x128xbf16>
    %c0_1 = arith.constant 0 : index
    %c0_2 = arith.constant 0 : index
    %1 = vector.load %arg2[%c0_1, %c0_2] : memref<128x128xbf16, #tpu.memory_space<vmem>>, vector<128x128xbf16>
    %cst = arith.constant dense<0.000000e+00> : vector<32x128xf32>
    %2 = tpu.matmul %0, %1, %cst {dimension_numbers = #tpu.dot_dimension_numbers<[1], [0], [0], [1], [0, 0, 1, 1], [], []>} : vector<32x128xbf16>, vector<128x128xbf16>, vector<32x128xf32> -> vector<32x128xf32>
    %c0_3 = arith.constant 0 : index
    %c0_4 = arith.constant 0 : index
    %3 = vector.load %arg4[%c0_3, %c0_4] : memref<1x128xf32, #tpu.memory_space<vmem>>, vector<1x128xf32>
    %4 = vector.broadcast %3 : vector<1x128xf32> to vector<32x128xf32>
    %5 = arith.addf %2, %4 : vector<32x128xf32>
    %c0_5 = arith.constant 0 : index
    %c0_6 = arith.constant 0 : index
    %6 = vector.load %arg5[%c0_5, %c0_6] : memref<32x128xf32, #tpu.memory_space<vmem>>, vector<32x128xf32>
    tpu.vector_store %arg5[%c0_5, %c0_6], %5 {strides = array<i32>} : memref<32x128xf32, #tpu.memory_space<vmem>>, vector<32x128xf32>,
    %c0_7 = arith.constant 0 : index
    %c0_8 = arith.constant 0 : index
    %7 = vector.load %arg3[%c0_7, %c0_8] : memref<128x128xbf16, #tpu.memory_space<vmem>>, vector<128x128xbf16>
    %cst_9 = arith.constant dense<0.000000e+00> : vector<32x128xf32>
    %8 = tpu.matmul %0, %7, %cst_9 {dimension_numbers = #tpu.dot_dimension_numbers<[1], [0], [0], [1], [0, 0, 1, 1], [], []>} : vector<32x128xbf16>, vector<128x128xbf16>, vector<32x128xf32> -> vector<32x128xf32>
    %c0_10 = arith.constant 0 : index
    %c0_11 = arith.constant 0 : index
    %9 = vector.load %arg6[%c0_10, %c0_11] : memref<32x128xf32, #tpu.memory_space<vmem>>, vector<32x128xf32>
    tpu.vector_store %arg6[%c0_10, %c0_11], %8 {strides = array<i32>} : memref<32x128xf32, #tpu.memory_space<vmem>>, vector<32x128xf32>,
    return
  }
  func.func @transform_0(%arg0: i32) -> (i32, i32) {
    %c0_i32 = arith.constant 0 : i32
    %c0_i32_0 = arith.constant 0 : i32
    return %arg0, %c0_i32 : i32, i32
  }
  func.func @transform_1(%arg0: i32) -> (i32, i32) {
    %c0_i32 = arith.constant 0 : i32
    %c0_i32_0 = arith.constant 0 : i32
    %c0_i32_1 = arith.constant 0 : i32
    return %c0_i32, %c0_i32_0 : i32, i32
  }
  func.func @transform_2(%arg0: i32) -> (i32, i32) {
    %c0_i32 = arith.constant 0 : i32
    %c0_i32_0 = arith.constant 0 : i32
    %c0_i32_1 = arith.constant 0 : i32
    return %c0_i32, %c0_i32_0 : i32, i32
  }
  func.func @transform_3(%arg0: i32) -> (i32, i32) {
    %c0_i32 = arith.constant 0 : i32
    %c0_i32_0 = arith.constant 0 : i32
    %c0_i32_1 = arith.constant 0 : i32
    return %c0_i32, %c0_i32_0 : i32, i32
  }
  func.func @transform_4(%arg0: i32) -> (i32, i32) {
    %c0_i32 = arith.constant 0 : i32
    %c0_i32_0 = arith.constant 0 : i32
    return %arg0, %c0_i32 : i32, i32
  }
  func.func @transform_5(%arg0: i32) -> (i32, i32) {
    %c0_i32 = arith.constant 0 : i32
    %c0_i32_0 = arith.constant 0 : i32
    return %arg0, %c0_i32 : i32, i32
  }
}

</mosaic_0001>

<llo_original>
// kernel: deform_conv3d_forward.1
$region0: #{deform_conv3d_forward.1}
  #allocation0 [shape = 'u32[]', space=smem, size = 0x4, offset = 0x4, fixed_abs, tag = 'smem constant byte address 0x4 - core index']
  #allocation1 [shape = 'u32[144,128]{1,0:T(1,128)}', space=vmem, size = 0x12000, scoped, tag = 'internal scratch']
  %s0 = inlined_call_operand.vmem [shape: bf16[64,128], index: 0, kind: input, shape index: {}]
  %s1 = inlined_call_operand.vmem [shape: bf16[128,128], index: 1, kind: input, shape index: {}]
  %s2 = inlined_call_operand.vmem [shape: bf16[128,128], index: 2, kind: input, shape index: {}]
  %s3 = inlined_call_operand.vmem [shape: f32[1,128], index: 3, kind: input, shape index: {}]
  %s4 = inlined_call_operand.vmem [shape: f32[64,128], index: 4, kind: output, shape index: {0}]
  %s5 = inlined_call_operand.hbm [shape: f32[64,128], index: 5, kind: output, shape index: {1}]
  %6 = xla_tuple %s4, %s5
  %s7 = sld [smem:[#allocation0]]
  $region57: #{deform_conv3d_forward.1} parent=0
    _
  %s9 = ssub.s32 1, %s7
  %s10 = scalar_select 0, %s9, %s7
  $region1: #{deform_conv3d_forward.1} parent=0
    #allocation2 [shape = 'u8[32768]{0}', space=vmem, size = 0x8000, scoped, tag = 'output window, operand 1']
    #allocation3 [shape = 's32[2]{0}', space=sflag, size = 0x8, scoped, tag = 'scoped memory for deform_conv3d_forward.1']
    %11 = vsyncpa [#allocation3], 0
    %s12 = scalar_lea.sflag [#allocation3], 1
    %13 = vsyncpa %s12, 0
    loop: start=0, step=1, limit=4
    $region2: #{deform_conv3d_forward.1} parent=1 // loop_pre_header
      _
    $region3: #{deform_conv3d_forward.1} parent=1 // loop_header
      %s15 = sphi 0, %s19
      %p16 = scmp.ge.s32.totalorder %s15, 4
      %s25 = sphi 0, %s27
      %s28 = sphi 0, %s25
      %s29 = sphi 0, %s28
      %s45 = sphi 0, %s29
      %s49 = sphi 0, %s49
      %s51 = sphi 0, %s49
      %s52 = sphi 0, %s51
      %s66 = sphi 0, %s52
      %s70 = sphi 0, %s70
      %s72 = sphi 0, %s70
      %s73 = sphi 0, %s72
      %s87 = sphi 0, %s73
      %s91 = sphi 0, %s91
      %s93 = sphi 0, %s91
      %s94 = sphi 0, %s93
      %s108 = sphi 0, %s94
      %s114 = sphi 0, %s116
      %s117 = sphi 0, %s114
      %s118 = sphi 0, %s117
      %s134 = sphi 0, %s118
      %s140 = sphi 0, %s142
      %s143 = sphi 0, %s140
      %s144 = sphi 0, %s143
      %s160 = sphi 0, %s144
    $region4: #{deform_conv3d_forward.1} parent=1 // loop_header_branch
      %18 = sbr.rel (%p16) target = $region8
    $region5: #{deform_conv3d_forward.1} parent=1 // loop_body
      %s20 = ssub.s32 %s15, 1
      %s21 = ssub.s32 %s15, 2
      %s22 = sadd.s32 %s15, 1
      %s23 = ssub.s32 %s15, %s22
      %p24 = scmp.eq.s32.totalorder %s23, 0
      %s26 = sadd.s32 %s25, 1
      %s27 = scalar_select %p24, %s25, %s26
      %p30 = pneg %p24
      %p31 = scmp.eq.s32.totalorder %s15, 1
      %p32 = por %p30, %p31
      %p33 = scmp.ne.s32.totalorder %s25, %s28
      %p34 = scmp.eq.s32.totalorder %s15, 0
      %p35 = por %p33, %p34
      %p36 = scmp.ne.s32.totalorder %s25, %s28
      %p37 = scmp.eq.s32.totalorder %s20, 1
      %p38 = por %p36, %p37
      %p39 = scmp.ne.s32.totalorder %s28, %s29
      %p40 = scmp.eq.s32.totalorder %s20, 0
      %p41 = por %p39, %p40
      %p42 = scmp.ne.s32.totalorder %s28, %s29
      %p43 = scmp.eq.s32.totalorder %s21, 1
      %p44 = por %p42, %p43
      %p46 = scmp.ne.s32.totalorder %s29, %s45
      %p47 = scmp.eq.s32.totalorder %s21, 0
      %p48 = por %p46, %p47
      %s50 = sadd.s32 %s49, 1
      %p53 = scmp.eq.s32.totalorder %s15, 1
      %p54 = scmp.ne.s32.totalorder %s49, %s51
      %p55 = scmp.eq.s32.totalorder %s15, 0
      %p56 = por %p54, %p55
      %p57 = scmp.ne.s32.totalorder %s49, %s51
      %p58 = scmp.eq.s32.totalorder %s20, 1
      %p59 = por %p57, %p58
      %p60 = scmp.ne.s32.totalorder %s51, %s52
      %p61 = scmp.eq.s32.totalorder %s20, 0
      %p62 = por %p60, %p61
      %p63 = scmp.ne.s32.totalorder %s51, %s52
      %p64 = scmp.eq.s32.totalorder %s21, 1
      %p65 = por %p63, %p64
      %p67 = scmp.ne.s32.totalorder %s52, %s66
      %p68 = scmp.eq.s32.totalorder %s21, 0
      %p69 = por %p67, %p68
      %s71 = sadd.s32 %s70, 1
      %p74 = scmp.eq.s32.totalorder %s15, 1
      %p75 = scmp.ne.s32.totalorder %s70, %s72
      %p76 = scmp.eq.s32.totalorder %s15, 0
      %p77 = por %p75, %p76
      %p78 = scmp.ne.s32.totalorder %s70, %s72
      %p79 = scmp.eq.s32.totalorder %s20, 1
      %p80 = por %p78, %p79
      %p81 = scmp.ne.s32.totalorder %s72, %s73
      %p82 = scmp.eq.s32.totalorder %s20, 0
      %p83 = por %p81, %p82
      %p84 = scmp.ne.s32.totalorder %s72, %s73
      %p85 = scmp.eq.s32.totalorder %s21, 1
      %p86 = por %p84, %p85
      %p88 = scmp.ne.s32.totalorder %s73, %s87
      %p89 = scmp.eq.s32.totalorder %s21, 0
      %p90 = por %p88, %p89
      %s92 = sadd.s32 %s91, 1
      %p95 = scmp.eq.s32.totalorder %s15, 1
      %p96 = scmp.ne.s32.totalorder %s91, %s93
      %p97 = scmp.eq.s32.totalorder %s15, 0
      %p98 = por %p96, %p97
      %p99 = scmp.ne.s32.totalorder %s91, %s93
      %p100 = scmp.eq.s32.totalorder %s20, 1
      %p101 = por %p99, %p100
      %p102 = scmp.ne.s32.totalorder %s93, %s94
      %p103 = scmp.eq.s32.totalorder %s20, 0
      %p104 = por %p102, %p103
      %p105 = scmp.ne.s32.totalorder %s93, %s94
      %p106 = scmp.eq.s32.totalorder %s21, 1
      %p107 = por %p105, %p106
      %p109 = scmp.ne.s32.totalorder %s94, %s108
      %p110 = scmp.eq.s32.totalorder %s21, 0
      %p111 = por %p109, %p110
      %s112 = ssub.s32 %s15, %s22
      %p113 = scmp.eq.s32.totalorder %s112, 0
      %s115 = sadd.s32 %s114, 1
      %s116 = scalar_select %p113, %s114, %s115
      %p119 = pneg %p113
      %p120 = scmp.eq.s32.totalorder %s15, 1
      %p121 = por %p119, %p120
      %p122 = scmp.ne.s32.totalorder %s114, %s117
      %p123 = scmp.eq.s32.totalorder %s15, 0
      %p124 = por %p122, %p123
      %p125 = scmp.ne.s32.totalorder %s114, %s117
      %p126 = scmp.eq.s32.totalorder %s20, 1
      %p127 = por %p125, %p126
      %p128 = scmp.ne.s32.totalorder %s117, %s118
      %p129 = scmp.eq.s32.totalorder %s20, 0
      %p130 = por %p128, %p129
      %p131 = scmp.ne.s32.totalorder %s117, %s118
      %p132 = scmp.eq.s32.totalorder %s21, 1
      %p133 = por %p131, %p132
      %p135 = scmp.ne.s32.totalorder %s118, %s134
      %p136 = scmp.eq.s32.totalorder %s21, 0
      %p137 = por %p135, %p136
      %s138 = ssub.s32 %s15, %s22
      %p139 = scmp.eq.s32.totalorder %s138, 0
      %s141 = sadd.s32 %s140, 1
      %s142 = scalar_select %p139, %s140, %s141
      %p145 = pneg %p139
      %p146 = scmp.eq.s32.totalorder %s15, 1
      %p147 = por %p145, %p146
      %p148 = scmp.ne.s32.totalorder %s140, %s143
      %p149 = scmp.eq.s32.totalorder %s15, 0
      %p150 = por %p148, %p149
      %p151 = scmp.ne.s32.totalorder %s140, %s143
      %p152 = scmp.eq.s32.totalorder %s20, 1
      %p153 = por %p151, %p152
      %p154 = scmp.ne.s32.totalorder %s143, %s144
      %p155 = scmp.eq.s32.totalorder %s20, 0
      %p156 = por %p154, %p155
      %p157 = scmp.ne.s32.totalorder %s143, %s144
      %p158 = scmp.eq.s32.totalorder %s21, 1
      %p159 = por %p157, %p158
      %p161 = scmp.ne.s32.totalorder %s144, %s160
      %p162 = scmp.eq.s32.totalorder %s21, 0
      %p163 = por %p161, %p162
      %p164 = scmp.le.s32.totalorder 1, %s15
      %p165 = scmp.lt.s32.totalorder %s15, 3
      %p166 = pnand %p164, %p165
      %p167 = pneg %p166
      // Predicated region
      $region9: #{deform_conv3d_forward.1} parent=5 // pred_check
        _
      $region10: #{deform_conv3d_forward.1} parent=5 // pred_check_branch
        %169 = sbr.rel (%p166) target = $region12
      $region11: #{deform_conv3d_forward.1} parent=5 // pred_region
        %s170 = ssub.s32 %s15, 1
        // Predicated region
        $region13: #{deform_conv3d_forward.1} parent=11 // pred_check
          %p171 = pneg %p62
        $region14: #{deform_conv3d_forward.1} parent=11 // pred_check_branch
          %173 = sbr.rel (%p171) target = $region16
        $region15: #{deform_conv3d_forward.1} parent=11 // pred_region
          _
        $region16: #{deform_conv3d_forward.1} parent=11 // pred_fallthru
          _
        // Predicated region
        $region17: #{deform_conv3d_forward.1} parent=11 // pred_check
          %p174 = pneg %p83
        $region18: #{deform_conv3d_forward.1} parent=11 // pred_check_branch
          %176 = sbr.rel (%p174) target = $region20
        $region19: #{deform_conv3d_forward.1} parent=11 // pred_region
          _
        $region20: #{deform_conv3d_forward.1} parent=11 // pred_fallthru
          _
        // Predicated region
        $region21: #{deform_conv3d_forward.1} parent=11 // pred_check
          %p177 = pneg %p104
        $region22: #{deform_conv3d_forward.1} parent=11 // pred_check_branch
          %179 = sbr.rel (%p177) target = $region24
        $region23: #{deform_conv3d_forward.1} parent=11 // pred_region
          _
        $region24: #{deform_conv3d_forward.1} parent=11 // pred_fallthru
          _
      $region12: #{deform_conv3d_forward.1} parent=5 // pred_fallthru
        _
      %p180 = scmp.lt.s32.totalorder %s15, 2
      // Predicated region
      $region25: #{deform_conv3d_forward.1} parent=5 // pred_check
        %p181 = pneg %p180
      $region26: #{deform_conv3d_forward.1} parent=5 // pred_check_branch
        %183 = sbr.rel (%p181) target = $region28
      $region27: #{deform_conv3d_forward.1} parent=5 // pred_region
        // Predicated region
        $region29: #{deform_conv3d_forward.1} parent=27 // pred_check
          %p184 = pneg %p35
        $region30: #{deform_conv3d_forward.1} parent=27 // pred_check_branch
          %186 = sbr.rel (%p184) target = $region32
        $region31: #{deform_conv3d_forward.1} parent=27 // pred_region
          %s187 = smul.u32 4, %s15
          %p188 = scmp.lt.s32.totalorder %s187, 7
          %s189 = scalar_select %p188, %s187, 7
          %s190 = smul.addr %s189, 4
          %s191 = scalar_lea.vmem %s0, %s190
          %s192 = smul.u32 4, %s15
        $region32: #{deform_conv3d_forward.1} parent=27 // pred_fallthru
          _
      $region28: #{deform_conv3d_forward.1} parent=5 // pred_fallthru
        _
      %p193 = scmp.le.s32.totalorder 1, %s15
      %p194 = scmp.lt.s32.totalorder %s15, 3
      %p195 = pnand %p193, %p194
      %p196 = pneg %p195
      // Predicated region
      $region33: #{deform_conv3d_forward.1} parent=5 // pred_check
        _
      $region34: #{deform_conv3d_forward.1} parent=5 // pred_check_branch
        %198 = sbr.rel (%p195) target = $region36
      $region35: #{deform_conv3d_forward.1} parent=5 // pred_region
        %s199 = ssub.s32 %s15, 1
        %s200 = smul.u32 4, %s20
        %p201 = scmp.lt.s32.totalorder %s200, 7
        %s202 = scalar_select %p201, %s200, 7
        %s203 = smul.addr %s202, 4
        %s204 = scalar_lea.vmem %s0, %s203
        %p205 = pneg %p41
        %p206 = pneg %p38
        %p207 = pneg %p62
        %p208 = pneg %p59
        %p209 = pneg %p83
        %p210 = pneg %p80
        %p211 = pneg %p104
        %p212 = pneg %p101
        %p213 = pneg %p130
        %p214 = pneg %p127
        %s215 = smul.u32 4, %s20
        %p216 = scmp.lt.s32.totalorder %s215, 7
        %s217 = scalar_select %p216, %s215, 7
        %s218 = smul.addr %s217, 8
        %s219 = scalar_lea.vmem %s4, %s218
        %p220 = pneg %p156
        %p221 = pneg %p153
        %s222 = sand.u32 %s143, 1
        %s223 = scalar_lea.sflag [#allocation3], %s222
        %s224 = sand.u32 %s143, 1
        %s225 = smul.addr %s224, 32
        %s226 = scalar_lea.vmem [#allocation2], %s225
        %s227 = smul.u32 4, %s20
        %p228 = scmp.lt.s32.totalorder %s227, 7
        %s229 = scalar_select %p228, %s227, 7
        %s230 = smul.addr %s229, 4
        %s231 = scalar_lea.vmem %s0, %s230
        %s232 = smul.u32 4, %s20
        %s233 = smul.u32 4, %s20
        %p234 = scmp.lt.s32.totalorder %s233, 7
        %s235 = scalar_select %p234, %s233, 7
        %s236 = smul.addr %s235, 8
        %s237 = scalar_lea.vmem %s4, %s236
        %s238 = smul.u32 4, %s20
        %s239 = smul.u32 4, %s20
        %v241 = vld [vmem:[%s231] sm:$0xf]
        %v242 = vld [vmem:[%s231 + $0x4] sm:$0xf]
        %v243 = vld [vmem:[%s231 + $0x8] sm:$0xf]
        %v244 = vld [vmem:[%s231 + $0xc] sm:$0xf]
        %v245 = vld [vmem:[%s1] sm:$0xf]
        %v246 = vld [vmem:[%s1 + $0x4] sm:$0xf]
        %v247 = vld [vmem:[%s1 + $0x8] sm:$0xf]
        %v248 = vld [vmem:[%s1 + $0xc] sm:$0xf]
        %v249 = vld [vmem:[%s1 + $0x10] sm:$0xf]
        %v250 = vld [vmem:[%s1 + $0x14] sm:$0xf]
        %v251 = vld [vmem:[%s1 + $0x18] sm:$0xf]
        %v252 = vld [vmem:[%s1 + $0x1c] sm:$0xf]
        %v253 = vld [vmem:[%s1 + $0x20] sm:$0xf]
        %v254 = vld [vmem:[%s1 + $0x24] sm:$0xf]
        %v255 = vld [vmem:[%s1 + $0x28] sm:$0xf]
        %v256 = vld [vmem:[%s1 + $0x2c] sm:$0xf]
        %v257 = vld [vmem:[%s1 + $0x30] sm:$0xf]
        %v258 = vld [vmem:[%s1 + $0x34] sm:$0xf]
        %v259 = vld [vmem:[%s1 + $0x38] sm:$0xf]
        %v260 = vld [vmem:[%s1 + $0x3c] sm:$0xf]
        %v261 = vld [vmem:[%s3] sm:$0x1]
        %v263 = vlaneseq
        %v264 = vshrl.u32 %v263, 7
        %v265 = vsub.s32 0, %v264
        %v266 = vrot.slane %v261, %v265
        %v272 = vunpack.c.l.b16 %v241
        %v273 = vunpack.c.l.b16 %v242
        %v274 = vunpack.c.l.b16 %v243
        %v275 = vunpack.c.l.b16 %v244
        %v276 = vpack.c.b16 %v273, %v272
        %v277 = vpack.c.b16 %v275, %v274
        %v296 = vunpack.c.l.b16 %v245
        %v297 = vunpack.c.l.b16 %v246
        %v298 = vunpack.c.l.b16 %v247
        %v299 = vunpack.c.l.b16 %v248
        %v300 = vunpack.c.l.b16 %v249
        %v301 = vunpack.c.l.b16 %v250
        %v302 = vunpack.c.l.b16 %v251
        %v303 = vunpack.c.l.b16 %v252
        %v304 = vunpack.c.l.b16 %v253
        %v305 = vunpack.c.l.b16 %v254
        %v306 = vunpack.c.l.b16 %v255
        %v307 = vunpack.c.l.b16 %v256
        %v308 = vunpack.c.l.b16 %v257
        %v309 = vunpack.c.l.b16 %v258
        %v310 = vunpack.c.l.b16 %v259
        %v311 = vunpack.c.l.b16 %v260
        %v312 = vpack.c.b16 %v297, %v296
        %v313 = vpack.c.b16 %v299, %v298
        %v314 = vpack.c.b16 %v301, %v300
        %v315 = vpack.c.b16 %v303, %v302
        %v316 = vpack.c.b16 %v305, %v304
        %v317 = vpack.c.b16 %v307, %v306
        %v318 = vpack.c.b16 %v309, %v308
        %v319 = vpack.c.b16 %v311, %v310
        %328 = vmatprep.subr.bf16.mxu0 0
        %329 = vmatpush1.bf16.msra.mxu0 %v312
        %330 = vmatprep.subr.bf16.mxu0 0
        %331 = vmatpush1.bf16.msra.mxu0 %v313
        %332 = vmatprep.subr.bf16.mxu0 0
        %333 = vmatpush1.bf16.msra.mxu0 %v314
        %334 = vmatprep.subr.bf16.mxu0 0
        %335 = vmatpush1.bf16.msra.mxu0 %v315
        %336 = vmatprep.subr.bf16.mxu0 0
        %337 = vmatpush1.bf16.msra.mxu0 %v316
        %338 = vmatprep.subr.bf16.mxu0 0
        %339 = vmatpush1.bf16.msra.mxu0 %v317
        %340 = vmatprep.subr.bf16.mxu0 0
        %341 = vmatpush1.bf16.msra.mxu0 %v318
        %342 = vmatprep.subr.bf16.mxu0 0
        %343 = vmatpush1.bf16.msra.mxu0 %v319
        %344 = vmatprep.subr.bf16.mxu0 0
        %345 = vmatpush1.bf16.msra.mxu0 0
        %346 = vmatprep.subr.bf16.mxu0 0
        %347 = vmatpush1.bf16.msra.mxu0 0
        %348 = vmatprep.subr.bf16.mxu0 0
        %349 = vmatpush1.bf16.msra.mxu0 0
        %350 = vmatprep.subr.bf16.mxu0 0
        %351 = vmatpush1.bf16.msra.mxu0 0
        %352 = vmatprep.subr.bf16.mxu0 0
        %353 = vmatpush1.bf16.msra.mxu0 0
        %354 = vmatprep.subr.bf16.mxu0 0
        %355 = vmatpush1.bf16.msra.mxu0 0
        %356 = vmatprep.subr.bf16.mxu0 0
        %357 = vmatpush1.bf16.msra.mxu0 0
        %358 = vmatprep.subr.bf16.mxu0 0
        %359 = vmatpush1.bf16.msra.mxu0 0
        %360 = vmatprep.mubr.bf16.mxu0 0
        %361 = vmatmul.mubr.bf16.gmra.mrb[0].mxu0 %v276
        %v362 = vpop.f32.mrb[0].mxu0
        %v363 = vadd.f32 %v266, %v362
        %v364 = vpop.f32.mrb[0].mxu0
        %v365 = vpop.f32.mrb[0].mxu0
        %v366 = vadd.f32 %v266, %v365
        %v367 = vpop.f32.mrb[0].mxu0
        %368 = vmatprep.mubr.bf16.mxu0 0
        %369 = vmatmul.mubr.bf16.gmra.mrb[0].mxu0 %v277
        %v370 = vpop.f32.mrb[0].mxu0
        %v371 = vadd.f32 %v266, %v370
        %v372 = vpop.f32.mrb[0].mxu0
        %v373 = vpop.f32.mrb[0].mxu0
        %v374 = vadd.f32 %v266, %v373
        %v375 = vpop.f32.mrb[0].mxu0
        %376 = vdwg.mxu0
        %377 = vst [vmem:[%s237] sm:$0xff] %v363
        %378 = vst [vmem:[%s237 + $0x8] sm:$0xff] %v366
        %379 = vst [vmem:[%s237 + $0x10] sm:$0xff] %v371
        %380 = vst [vmem:[%s237 + $0x18] sm:$0xff] %v374
        %v381 = vld [vmem:[%s2] sm:$0xf]
        %v382 = vld [vmem:[%s2 + $0x4] sm:$0xf]
        %v383 = vld [vmem:[%s2 + $0x8] sm:$0xf]
        %v384 = vld [vmem:[%s2 + $0xc] sm:$0xf]
        %v385 = vld [vmem:[%s2 + $0x10] sm:$0xf]
        %v386 = vld [vmem:[%s2 + $0x14] sm:$0xf]
        %v387 = vld [vmem:[%s2 + $0x18] sm:$0xf]
        %v388 = vld [vmem:[%s2 + $0x1c] sm:$0xf]
        %v389 = vld [vmem:[%s2 + $0x20] sm:$0xf]
        %v390 = vld [vmem:[%s2 + $0x24] sm:$0xf]
        %v391 = vld [vmem:[%s2 + $0x28] sm:$0xf]
        %v392 = vld [vmem:[%s2 + $0x2c] sm:$0xf]
        %v393 = vld [vmem:[%s2 + $0x30] sm:$0xf]
        %v394 = vld [vmem:[%s2 + $0x34] sm:$0xf]
        %v395 = vld [vmem:[%s2 + $0x38] sm:$0xf]
        %v396 = vld [vmem:[%s2 + $0x3c] sm:$0xf]
        %v413 = vunpack.c.l.b16 %v381
        %v414 = vunpack.c.l.b16 %v382
        %v415 = vunpack.c.l.b16 %v383
        %v416 = vunpack.c.l.b16 %v384
        %v417 = vunpack.c.l.b16 %v385
        %v418 = vunpack.c.l.b16 %v386
        %v419 = vunpack.c.l.b16 %v387
        %v420 = vunpack.c.l.b16 %v388
        %v421 = vunpack.c.l.b16 %v389
        %v422 = vunpack.c.l.b16 %v390
        %v423 = vunpack.c.l.b16 %v391
        %v424 = vunpack.c.l.b16 %v392
        %v425 = vunpack.c.l.b16 %v393
        %v426 = vunpack.c.l.b16 %v394
        %v427 = vunpack.c.l.b16 %v395
        %v428 = vunpack.c.l.b16 %v396
        %v429 = vpack.c.b16 %v414, %v413
        %v430 = vpack.c.b16 %v416, %v415
        %v431 = vpack.c.b16 %v418, %v417
        %v432 = vpack.c.b16 %v420, %v419
        %v433 = vpack.c.b16 %v422, %v421
        %v434 = vpack.c.b16 %v424, %v423
        %v435 = vpack.c.b16 %v426, %v425
        %v436 = vpack.c.b16 %v428, %v427
        %445 = vmatprep.subr.bf16.mxu0 0
        %446 = vmatpush1.bf16.msra.mxu0 %v429
        %447 = vmatprep.subr.bf16.mxu0 0
        %448 = vmatpush1.bf16.msra.mxu0 %v430
        %449 = vmatprep.subr.bf16.mxu0 0
        %450 = vmatpush1.bf16.msra.mxu0 %v431
        %451 = vmatprep.subr.bf16.mxu0 0
        %452 = vmatpush1.bf16.msra.mxu0 %v432
        %453 = vmatprep.subr.bf16.mxu0 0
        %454 = vmatpush1.bf16.msra.mxu0 %v433
        %455 = vmatprep.subr.bf16.mxu0 0
        %456 = vmatpush1.bf16.msra.mxu0 %v434
        %457 = vmatprep.subr.bf16.mxu0 0
        %458 = vmatpush1.bf16.msra.mxu0 %v435
        %459 = vmatprep.subr.bf16.mxu0 0
        %460 = vmatpush1.bf16.msra.mxu0 %v436
        %461 = vmatprep.subr.bf16.mxu0 0
        %462 = vmatpush1.bf16.msra.mxu0 0
        %463 = vmatprep.subr.bf16.mxu0 0
        %464 = vmatpush1.bf16.msra.mxu0 0
        %465 = vmatprep.subr.bf16.mxu0 0
        %466 = vmatpush1.bf16.msra.mxu0 0
        %467 = vmatprep.subr.bf16.mxu0 0
        %468 = vmatpush1.bf16.msra.mxu0 0
        %469 = vmatprep.subr.bf16.mxu0 0
        %470 = vmatpush1.bf16.msra.mxu0 0
        %471 = vmatprep.subr.bf16.mxu0 0
        %472 = vmatpush1.bf16.msra.mxu0 0
        %473 = vmatprep.subr.bf16.mxu0 0
        %474 = vmatpush1.bf16.msra.mxu0 0
        %475 = vmatprep.subr.bf16.mxu0 0
        %476 = vmatpush1.bf16.msra.mxu0 0
        %477 = vmatprep.mubr.bf16.mxu0 0
        %478 = vmatmul.mubr.bf16.gmra.mrb[0].mxu0 %v276
        %v479 = vpop.f32.mrb[0].mxu0
        %v480 = vadd.f32 0.0, %v479
        %v481 = vpop.f32.mrb[0].mxu0
        %v482 = vpop.f32.mrb[0].mxu0
        %v483 = vadd.f32 0.0, %v482
        %v484 = vpop.f32.mrb[0].mxu0
        %485 = vmatprep.mubr.bf16.mxu0 0
        %486 = vmatmul.mubr.bf16.gmra.mrb[0].mxu0 %v277
        %v487 = vpop.f32.mrb[0].mxu0
        %v488 = vadd.f32 0.0, %v487
        %v489 = vpop.f32.mrb[0].mxu0
        %v490 = vpop.f32.mrb[0].mxu0
        %v491 = vadd.f32 0.0, %v490
        %v492 = vpop.f32.mrb[0].mxu0
        %493 = vdwg.mxu0
        %494 = vst [vmem:[%s226] sm:$0xff] %v480
        %495 = vst [vmem:[%s226 + $0x8] sm:$0xff] %v483
        %496 = vst [vmem:[%s226 + $0x10] sm:$0xff] %v488
        %497 = vst [vmem:[%s226 + $0x18] sm:$0xff] %v491
        %s498 = smul.u32 4, %s20
        %p499 = scmp.lt.s32.totalorder %s498, 7
        %s500 = scalar_select %p499, %s498, 7
        %s501 = smul.addr %s500, 8
        %s502 = scalar_lea.vmem %s4, %s501
        %s503 = sand.u32 %s143, 1
        %s504 = scalar_lea.sflag [#allocation3], %s503
        %s505 = sand.u32 %s143, 1
        %s506 = smul.addr %s505, 32
        %s507 = scalar_lea.vmem [#allocation2], %s506
        // Predicated region
        $region37: #{deform_conv3d_forward.1} parent=35 // pred_check
          %p508 = pneg %p127
        $region38: #{deform_conv3d_forward.1} parent=35 // pred_check_branch
          %510 = sbr.rel (%p508) target = $region40
        $region39: #{deform_conv3d_forward.1} parent=35 // pred_region
          %s511 = smul.u32 4, %s20
        $region40: #{deform_conv3d_forward.1} parent=35 // pred_fallthru
          _
        // Predicated region
        $region41: #{deform_conv3d_forward.1} parent=35 // pred_check
          %p512 = pneg %p153
        $region42: #{deform_conv3d_forward.1} parent=35 // pred_check_branch
          %514 = sbr.rel (%p512) target = $region44
        $region43: #{deform_conv3d_forward.1} parent=35 // pred_region
          %s515 = smul.u32 4, %s20
          %s517 = ssub.s32 512, 512
          %518 = vsyncadd %s504, %s517
          %s519 = smul.addr %s515, 128
          %s520 = scalar_lea.hbm %s5, %s519
          %s521 = sshll.u32 %s507, 4
          %s522 = int_to_ptr.vmem [resolvable:$true] %s521
          %527 = dma.vmem_to_hbm [thread:$0]  %s522, 512, %s520, %s504, 128, 128, 8
        $region44: #{deform_conv3d_forward.1} parent=35 // pred_fallthru
          _
      $region36: #{deform_conv3d_forward.1} parent=5 // pred_fallthru
        _
      %p528 = scmp.le.s32.totalorder 2, %s15
      // Predicated region
      $region45: #{deform_conv3d_forward.1} parent=5 // pred_check
        %p529 = pneg %p528
      $region46: #{deform_conv3d_forward.1} parent=5 // pred_check_branch
        %531 = sbr.rel (%p529) target = $region48
      $region47: #{deform_conv3d_forward.1} parent=5 // pred_region
        %s532 = ssub.s32 %s15, 2
        // Predicated region
        $region49: #{deform_conv3d_forward.1} parent=47 // pred_check
          %p533 = pneg %p133
        $region50: #{deform_conv3d_forward.1} parent=47 // pred_check_branch
          %535 = sbr.rel (%p533) target = $region52
        $region51: #{deform_conv3d_forward.1} parent=47 // pred_region
          %s536 = smul.u32 4, %s21
          %p537 = scmp.lt.s32.totalorder %s536, 7
          %s538 = scalar_select %p537, %s536, 7
          %s539 = smul.addr %s538, 8
          %s540 = scalar_lea.vmem %s4, %s539
        $region52: #{deform_conv3d_forward.1} parent=47 // pred_fallthru
          _
        // Predicated region
        $region53: #{deform_conv3d_forward.1} parent=47 // pred_check
          %p541 = pneg %p159
        $region54: #{deform_conv3d_forward.1} parent=47 // pred_check_branch
          %543 = sbr.rel (%p541) target = $region56
        $region55: #{deform_conv3d_forward.1} parent=47 // pred_region
          %s544 = sand.u32 %s144, 1
          %s545 = scalar_lea.sflag [#allocation3], %s544
          %s546 = sand.u32 %s144, 1
          %s547 = smul.addr %s546, 32
          %s548 = scalar_lea.vmem [#allocation2], %s547
          %549 = dma.done %s545, 512
        $region56: #{deform_conv3d_forward.1} parent=47 // pred_fallthru
          _
      $region48: #{deform_conv3d_forward.1} parent=5 // pred_fallthru
        _
    $region6: #{deform_conv3d_forward.1} parent=1 // loop_footer
      %s19 = sadd.s32 1, %s15
    $region7: #{deform_conv3d_forward.1} parent=1 // loop_footer_branch
      %14 = sbr.rel target = $region3
    $region8: #{deform_conv3d_forward.1} parent=1 // loop_exit
      _
    %550 = vsyncpa [#allocation3], 1
    %s551 = scalar_lea.sflag [#allocation3], 1
    %552 = vsyncpa %s551, 1

</llo_original>
